<compile_context>
chip_gen: v6e
topology: v6e:2x2x1
jax: 0.10.0
libtpu: 0.0.40
codegen_flags: <defaults>
</compile_context>

<pallas_src>
import functools

import jax
import jax.numpy as jnp
from jax import lax
from jax.experimental import pallas as pl
from jax.experimental.pallas import tpu as pltpu


def _conv_kernel(x_ref, w_ref, b_ref, o_ref, patches_ref, *,
                 nb, cin, ksize, pad, width, m):
    """One grid step: im2col `nb` batch elements into an aligned f32 scratch,
    then a single MXU contraction.

    x_ref       : (nb, cin, Lf)   f32  flat, zero-padded input (cin padded to 8k)
    w_ref       : (Cout, K)       f32  flattened weights, rows ordered (kh,kw,ci)
    b_ref       : (Cout, 1)       f32
    o_ref       : (nb, Cout, M)   f32  M = Ho*Wo (lane-dense stores)
    patches_ref : (K, nb*M)       f32  VMEM scratch, im2col matrix
    """
    # Width-boundary masks depend only on kw: build the <=ksize distinct masks
    # once (hoisted out of the unrolled tap loop) and reuse across all kh.
    col = lax.broadcasted_iota(jnp.int32, (cin, m), 1) % width
    kw_mask = []
    for kw in range(ksize):
        lo, hi = pad - kw, width + pad - kw
        if lo > 0 or hi < width:
            kw_mask.append((col >= lo) & (col < hi))
        else:
            kw_mask.append(None)

    # im2col.  Tap (kh, kw) of image i is a *contiguous* lane slice of the flat
    # padded input: element g = y*W + x of the slice holds x_padded[y+kh, x+kw].
    # With cin padded to a multiple of 8, every scratch store is a full
    # 8-sublane-aligned f32 tile; column offsets are multiples of 128.
    for i in range(nb):
        xf = x_ref[i]                                            # (cin, Lf)
        for kh in range(ksize):
            for kw in range(ksize):
                sh = kh * width + kw
                patch = xf[:, sh:sh + m]                         # (cin, M)
                if kw_mask[kw] is not None:
                    # Lanes whose x + kw - pad falls outside [0, W) wrapped into
                    # the neighbouring row of the flat layout -> zero them.
                    patch = jnp.where(kw_mask[kw], patch, 0.0)
                t = kh * ksize + kw
                patches_ref[t * cin:(t + 1) * cin, i * m:(i + 1) * m] = patch

    # Single K = KH*KW*Cin_pad contraction on the MXU, f32 operands / f32
    # accumulate (multi-pass MXU: exact-parity with the f32 PyTorch conv; the
    # MXU is nearly idle at this size so the extra passes are free), then one
    # bias add on the (Cout, nb*M) result.
    acc = jnp.dot(w_ref[...], patches_ref[...],
                  preferred_element_type=jnp.float32)            # (Cout, nb*M)
    acc = acc + b_ref[...]
    for i in range(nb):
        o_ref[i] = acc[:, i * m:(i + 1) * m].astype(o_ref.dtype)


def _num_tensorcores_per_chip():
    """2 for chips whose TensorCores share a grid via 'parallel' axes
    (v7x; megacore v4/v5p), else 1 (v5e/v6e).  Conservative fallback = 1."""
    try:
        kind = jax.devices()[0].device_kind.lower()
    except Exception:
        return 1
    return 2 if any(s in kind for s in ("v7", "7x", "v4", "v5p")) else 1


def basic_conv2d_pallas(x_nchw, weight, bias, *, stride=1, padding=1):
    """BasicConv2d forward: Conv2d(inplanes, planes, k, stride, padding) + bias.

    x_nchw : (N, Cin, H, W)       float32  (PyTorch layout)
    weight : (Cout, Cin, KH, KW)  float32  (PyTorch layout)
    bias   : (Cout,)              float32
    returns: (N, Cout, Ho, Wo)    float32  (PyTorch layout)
    """
    n, cin, h, w = x_nchw.shape
    cout, cin_w, kh_, kw_ = weight.shape
    assert cin_w == cin and kh_ == kw_, "square kernels only"
    ksize = kh_
    if stride != 1 or 2 * padding != ksize - 1:
        # TODO(synk): general stride / non-"same" padding needs a strided-window
        # path; BasicConv2d is only exercised here with stride-1 "same" convs.
        raise NotImplementedError("only stride=1 'same' convolutions supported")

    ho, wo = h, w                        # "same" conv
    m = ho * wo                          # per-image flattened spatial (lane dim)
    cin_p = ((cin + 7) // 8) * 8         # pad channels to f32 sublane tile (8)
    k_p = ksize * ksize * cin_p          # padded contraction size
    edge = padding * (w + 1)             # flat pad: `padding` rows + guard elem
    lf = m + 2 * edge
    lf_pad = ((lf + 127) // 128) * 128   # lane-pad flat axis to a 128 multiple

    # Grid: collapse to one step (batch folded into lanes) on single-TC chips;
    # keep >=2 "parallel" steps on 2-TC chips so both TensorCores get work.
    num_tc = _num_tensorcores_per_chip()
    if num_tc <= 1:
        g = 1
    elif n % num_tc == 0:
        g = num_tc
    else:
        g = n
    nb = n // g                          # batch elements handled per grid step

    # Activation stays NCHW; channel zero-pad + flat zero-pad are the only data
    # ops (flattening H,W and the final reshape back are free bitcasts).
    xc = jnp.pad(x_nchw, ((0, 0), (0, cin_p - cin), (0, 0), (0, 0)))
    x_flat = jnp.pad(xc.reshape(n, cin_p, m),
                     ((0, 0), (0, 0), (edge, edge + (lf_pad - lf))))
    # Weights: pad channels, flatten to one f32 (Cout, K) tile, row order
    # (kh, kw, ci) to match the im2col row order.  Read once (constant index_map).
    wc = jnp.pad(weight, ((0, 0), (0, cin_p - cin), (0, 0), (0, 0)))
    w2 = jnp.transpose(wc, (0, 2, 3, 1)).reshape(cout, k_p).astype(jnp.float32)
    b2 = bias.astype(jnp.float32).reshape(cout, 1)

    kernel = functools.partial(_conv_kernel, nb=nb, cin=cin_p, ksize=ksize,
                               pad=padding, width=w, m=m)

    out_flat = pl.pallas_call(
        kernel,
        out_shape=jax.ShapeDtypeStruct((n, cout, m), x_nchw.dtype),
        grid_spec=pltpu.PrefetchScalarGridSpec(
            num_scalar_prefetch=0,
            grid=(g,),
            in_specs=[
                pl.BlockSpec((nb, cin_p, lf_pad), lambda b: (b, 0, 0)),
                pl.BlockSpec((cout, k_p), lambda b: (0, 0)),
                pl.BlockSpec((cout, 1), lambda b: (0, 0)),
            ],
            out_specs=pl.BlockSpec((nb, cout, m), lambda b: (b, 0, 0)),
            scratch_shapes=[pltpu.VMEM((k_p, nb * m), jnp.float32)],
        ),
        compiler_params=pltpu.CompilerParams(
            dimension_semantics=("parallel",),       # shards steps across TCs
            vmem_limit_bytes=32 * 1024 * 1024,       # explicit; tiny usage here
        ),
    )(x_flat, w2, b2)

    # (N, Cout, Ho*Wo) -> (N, Cout, Ho, Wo): free, row-major bitcast.
    return out_flat.reshape(n, cout, ho, wo)


if __name__ == "__main__":
    # BasicConv2d(inplanes=4, planes=8, kernel_size=3, stride=1, padding=1)
    inplanes, planes, ksize, stride, padding = 4, 8, 3, 1, 1
    N, H, W = 2, 16, 16

    key = jax.random.PRNGKey(0)
    kx, kw_, kb = jax.random.split(key, 3)
    x = jax.random.normal(kx, (N, inplanes, H, W), jnp.float32)
    weight = jax.random.normal(kw_, (planes, inplanes, ksize, ksize), jnp.float32) * 0.1
    bias = jax.random.normal(kb, (planes,), jnp.float32) * 0.1

    out = basic_conv2d_pallas(x, weight, bias, stride=stride, padding=padding)
    out = jax.block_until_ready(out)

    # Cross-check against XLA's conv (same semantics as torch.nn.Conv2d).
    # HIGHEST precision so the reference itself is full f32 on TPU.
    ref = lax.conv_general_dilated(
        x, weight,
        window_strides=(stride, stride),
        padding=((padding, padding), (padding, padding)),
        dimension_numbers=("NCHW", "OIHW", "NCHW"),
        precision=lax.Precision.HIGHEST,
    ) + bias.reshape(1, planes, 1, 1)

    assert out.shape == (N, planes, H, W)
    max_err = float(jnp.max(jnp.abs(out - ref)))
    # f32 operands / f32 accumulate in the kernel -> parity with the PyTorch
    # f32 Conv2d; tolerance tightened vs the old bf16 version.
    assert jnp.allclose(out, ref, atol=2e-3, rtol=2e-3), f"max abs err {max_err}"
    print("KERNEL_OK")
</pallas_src>

<mosaic_0001>
module attributes {stable_mosaic.version = 11 : i64} {
  func.func @_conv_kernel(%arg0: i32, %arg1: memref<2x8x384xf32, #tpu.memory_space<vmem>>, %arg2: memref<8x72xf32, #tpu.memory_space<vmem>>, %arg3: memref<8x1xf32, #tpu.memory_space<vmem>>, %arg4: memref<2x8x256xf32, #tpu.memory_space<vmem>>, %arg5: memref<72x512xf32, #tpu.memory_space<vmem>>) attributes {dimension_semantics = [#tpu.dimension_semantics<parallel>], iteration_bounds = array<i64: 1>, scalar_prefetch = 0 : i64, scratch_operands = 1 : i64, tpu.core_type = #tpu.core_type<tc>, window_params = [{transform_indices = @transform_0, window_bounds = array<i64: 2, 8, 384>}, {pipeline_mode = #tpu.pipeline_mode<synchronous>, transform_indices = @transform_1, window_bounds = array<i64: 8, 72>}, {pipeline_mode = #tpu.pipeline_mode<synchronous>, transform_indices = @transform_2, window_bounds = array<i64: 8, 1>}, {transform_indices = @transform_3, window_bounds = array<i64: 2, 8, 256>}]} {
    %0 = tpu.iota {dimensions = array<i32: 1>} : vector<8x256xi32>
    %c16_i32 = arith.constant 16 : i32
    %c0_i32 = arith.constant 0 : i32
    %1 = arith.cmpi eq, %c16_i32, %c0_i32 : i32
    %c1_i32 = arith.constant 1 : i32
    %2 = arith.select %1, %c1_i32, %c16_i32 : i32
    %3 = vector.broadcast %2 : i32 to vector<8x256xi32>
    %4 = arith.remsi %0, %3 : vector<8x256xi32>
    %c0_i32_0 = arith.constant 0 : i32
    %5 = vector.broadcast %c0_i32_0 : i32 to vector<8x256xi32>
    %6 = arith.cmpi ne, %4, %5 : vector<8x256xi32>
    %c0_i32_1 = arith.constant 0 : i32
    %7 = vector.broadcast %c0_i32_1 : i32 to vector<8x256xi32>
    %8 = arith.cmpi slt, %4, %7 : vector<8x256xi32>
    %c0_i32_2 = arith.constant 0 : i32
    %9 = arith.cmpi slt, %2, %c0_i32_2 : i32
    %10 = vector.broadcast %9 : i1 to vector<8x256xi1>
    %11 = vector.broadcast %10 : vector<8x256xi1> to vector<8x256xi1>
    %12 = arith.xori %8, %11 : vector<8x256xi1>
    %13 = arith.andi %12, %6 : vector<8x256xi1>
    %14 = vector.broadcast %2 : i32 to vector<8x256xi32>
    %15 = arith.addi %4, %14 : vector<8x256xi32>
    %16 = arith.select %13, %15, %4 : vector<8x256xi1>, vector<8x256xi32>
    %c1_i32_3 = arith.constant 1 : i32
    %17 = vector.broadcast %c1_i32_3 : i32 to vector<8x256xi32>
    %18 = arith.cmpi sge, %16, %17 : vector<8x256xi32>
    %c17_i32 = arith.constant 17 : i32
    %19 = vector.broadcast %c17_i32 : i32 to vector<8x256xi32>
    %20 = arith.cmpi slt, %16, %19 : vector<8x256xi32>
    %21 = arith.andi %18, %20 : vector<8x256xi1>
    %c-1_i32 = arith.constant -1 : i32
    %22 = vector.broadcast %c-1_i32 : i32 to vector<8x256xi32>
    %23 = arith.cmpi sge, %16, %22 : vector<8x256xi32>
    %c15_i32 = arith.constant 15 : i32
    %24 = vector.broadcast %c15_i32 : i32 to vector<8x256xi32>
    %25 = arith.cmpi slt, %16, %24 : vector<8x256xi32>
    %26 = arith.andi %23, %25 : vector<8x256xi1>
    %c0 = arith.constant 0 : index
    %c0_4 = arith.constant 0 : index
    %c0_5 = arith.constant 0 : index
    %27 = vector.load %arg1[%c0, %c0_4, %c0_5] : memref<2x8x384xf32, #tpu.memory_space<vmem>>, vector<1x8x384xf32>
    %28 = vector.shape_cast %27 : vector<1x8x384xf32> to vector<8x384xf32>
    %29 = vector.extract_strided_slice %28 {offsets = [0, 0], sizes = [8, 256], strides = [1, 1]} : vector<8x384xf32> to vector<8x256xf32>
    %cst = arith.constant 0.000000e+00 : f32
    %30 = vector.broadcast %cst : f32 to vector<8x256xf32>
    %31 = arith.select %21, %29, %30 : vector<8x256xi1>, vector<8x256xf32>
    %c0_6 = arith.constant 0 : index
    %c0_7 = arith.constant 0 : index
    %32 = vector.load %arg5[%c0_6, %c0_7] : memref<72x512xf32, #tpu.memory_space<vmem>>, vector<8x256xf32>
    tpu.vector_store %arg5[%c0_6, %c0_7], %31 {strides = array<i32>} : memref<72x512xf32, #tpu.memory_space<vmem>>, vector<8x256xf32>,
    %33 = vector.extract_strided_slice %28 {offsets = [0, 1], sizes = [8, 256], strides = [1, 1]} : vector<8x384xf32> to vector<8x256xf32>
    %c8 = arith.constant 8 : index
    %c0_8 = arith.constant 0 : index
    %34 = vector.load %arg5[%c8, %c0_8] : memref<72x512xf32, #tpu.memory_space<vmem>>, vector<8x256xf32>
    tpu.vector_store %arg5[%c8, %c0_8], %33 {strides = array<i32>} : memref<72x512xf32, #tpu.memory_space<vmem>>, vector<8x256xf32>,
    %35 = vector.extract_strided_slice %28 {offsets = [0, 2], sizes = [8, 256], strides = [1, 1]} : vector<8x384xf32> to vector<8x256xf32>
    %cst_9 = arith.constant 0.000000e+00 : f32
    %36 = vector.broadcast %cst_9 : f32 to vector<8x256xf32>
    %37 = arith.select %26, %35, %36 : vector<8x256xi1>, vector<8x256xf32>
    %c16 = arith.constant 16 : index
    %c0_10 = arith.constant 0 : index
    %38 = vector.load %arg5[%c16, %c0_10] : memref<72x512xf32, #tpu.memory_space<vmem>>, vector<8x256xf32>
    tpu.vector_store %arg5[%c16, %c0_10], %37 {strides = array<i32>} : memref<72x512xf32, #tpu.memory_space<vmem>>, vector<8x256xf32>,
    %39 = vector.extract_strided_slice %28 {offsets = [0, 16], sizes = [8, 256], strides = [1, 1]} : vector<8x384xf32> to vector<8x256xf32>
    %cst_11 = arith.constant 0.000000e+00 : f32
    %40 = vector.broadcast %cst_11 : f32 to vector<8x256xf32>
    %41 = arith.select %21, %39, %40 : vector<8x256xi1>, vector<8x256xf32>
    %c24 = arith.constant 24 : index
    %c0_12 = arith.constant 0 : index
    %42 = vector.load %arg5[%c24, %c0_12] : memref<72x512xf32, #tpu.memory_space<vmem>>, vector<8x256xf32>
    tpu.vector_store %arg5[%c24, %c0_12], %41 {strides = array<i32>} : memref<72x512xf32, #tpu.memory_space<vmem>>, vector<8x256xf32>,
    %43 = vector.extract_strided_slice %28 {offsets = [0, 17], sizes = [8, 256], strides = [1, 1]} : vector<8x384xf32> to vector<8x256xf32>
    %c32 = arith.constant 32 : index
    %c0_13 = arith.constant 0 : index
    %44 = vector.load %arg5[%c32, %c0_13] : memref<72x512xf32, #tpu.memory_space<vmem>>, vector<8x256xf32>
    tpu.vector_store %arg5[%c32, %c0_13], %43 {strides = array<i32>} : memref<72x512xf32, #tpu.memory_space<vmem>>, vector<8x256xf32>,
    %45 = vector.extract_strided_slice %28 {offsets = [0, 18], sizes = [8, 256], strides = [1, 1]} : vector<8x384xf32> to vector<8x256xf32>
    %cst_14 = arith.constant 0.000000e+00 : f32
    %46 = vector.broadcast %cst_14 : f32 to vector<8x256xf32>
    %47 = arith.select %26, %45, %46 : vector<8x256xi1>, vector<8x256xf32>
    %c40 = arith.constant 40 : index
    %c0_15 = arith.constant 0 : index
    %48 = vector.load %arg5[%c40, %c0_15] : memref<72x512xf32, #tpu.memory_space<vmem>>, vector<8x256xf32>
    tpu.vector_store %arg5[%c40, %c0_15], %47 {strides = array<i32>} : memref<72x512xf32, #tpu.memory_space<vmem>>, vector<8x256xf32>,
    %49 = vector.extract_strided_slice %28 {offsets = [0, 32], sizes = [8, 256], strides = [1, 1]} : vector<8x384xf32> to vector<8x256xf32>
    %cst_16 = arith.constant 0.000000e+00 : f32
    %50 = vector.broadcast %cst_16 : f32 to vector<8x256xf32>
    %51 = arith.select %21, %49, %50 : vector<8x256xi1>, vector<8x256xf32>
    %c48 = arith.constant 48 : index
    %c0_17 = arith.constant 0 : index
    %52 = vector.load %arg5[%c48, %c0_17] : memref<72x512xf32, #tpu.memory_space<vmem>>, vector<8x256xf32>
    tpu.vector_store %arg5[%c48, %c0_17], %51 {strides = array<i32>} : memref<72x512xf32, #tpu.memory_space<vmem>>, vector<8x256xf32>,
    %53 = vector.extract_strided_slice %28 {offsets = [0, 33], sizes = [8, 256], strides = [1, 1]} : vector<8x384xf32> to vector<8x256xf32>
    %c56 = arith.constant 56 : index
    %c0_18 = arith.constant 0 : index
    %54 = vector.load %arg5[%c56, %c0_18] : memref<72x512xf32, #tpu.memory_space<vmem>>, vector<8x256xf32>
    tpu.vector_store %arg5[%c56, %c0_18], %53 {strides = array<i32>} : memref<72x512xf32, #tpu.memory_space<vmem>>, vector<8x256xf32>,
    %55 = vector.extract_strided_slice %28 {offsets = [0, 34], sizes = [8, 256], strides = [1, 1]} : vector<8x384xf32> to vector<8x256xf32>
    %cst_19 = arith.constant 0.000000e+00 : f32
    %56 = vector.broadcast %cst_19 : f32 to vector<8x256xf32>
    %57 = arith.select %26, %55, %56 : vector<8x256xi1>, vector<8x256xf32>
    %c64 = arith.constant 64 : index
    %c0_20 = arith.constant 0 : index
    %58 = vector.load %arg5[%c64, %c0_20] : memref<72x512xf32, #tpu.memory_space<vmem>>, vector<8x256xf32>
    tpu.vector_store %arg5[%c64, %c0_20], %57 {strides = array<i32>} : memref<72x512xf32, #tpu.memory_space<vmem>>, vector<8x256xf32>,
    %c1 = arith.constant 1 : index
    %c0_21 = arith.constant 0 : index
    %c0_22 = arith.constant 0 : index
    %59 = vector.load %arg1[%c1, %c0_21, %c0_22] : memref<2x8x384xf32, #tpu.memory_space<vmem>>, vector<1x8x384xf32>
    %60 = vector.shape_cast %59 : vector<1x8x384xf32> to vector<8x384xf32>
    %61 = vector.extract_strided_slice %60 {offsets = [0, 0], sizes = [8, 256], strides = [1, 1]} : vector<8x384xf32> to vector<8x256xf32>
    %cst_23 = arith.constant 0.000000e+00 : f32
    %62 = vector.broadcast %cst_23 : f32 to vector<8x256xf32>
    %63 = arith.select %21, %61, %62 : vector<8x256xi1>, vector<8x256xf32>
    %c0_24 = arith.constant 0 : index
    %c256 = arith.constant 256 : index
    %64 = vector.load %arg5[%c0_24, %c256] : memref<72x512xf32, #tpu.memory_space<vmem>>, vector<8x256xf32>
    tpu.vector_store %arg5[%c0_24, %c256], %63 {strides = array<i32>} : memref<72x512xf32, #tpu.memory_space<vmem>>, vector<8x256xf32>,
    %65 = vector.extract_strided_slice %60 {offsets = [0, 1], sizes = [8, 256], strides = [1, 1]} : vector<8x384xf32> to vector<8x256xf32>
    %c8_25 = arith.constant 8 : index
    %c256_26 = arith.constant 256 : index
    %66 = vector.load %arg5[%c8_25, %c256_26] : memref<72x512xf32, #tpu.memory_space<vmem>>, vector<8x256xf32>
    tpu.vector_store %arg5[%c8_25, %c256_26], %65 {strides = array<i32>} : memref<72x512xf32, #tpu.memory_space<vmem>>, vector<8x256xf32>,
    %67 = vector.extract_strided_slice %60 {offsets = [0, 2], sizes = [8, 256], strides = [1, 1]} : vector<8x384xf32> to vector<8x256xf32>
    %cst_27 = arith.constant 0.000000e+00 : f32
    %68 = vector.broadcast %cst_27 : f32 to vector<8x256xf32>
    %69 = arith.select %26, %67, %68 : vector<8x256xi1>, vector<8x256xf32>
    %c16_28 = arith.constant 16 : index
    %c256_29 = arith.constant 256 : index
    %70 = vector.load %arg5[%c16_28, %c256_29] : memref<72x512xf32, #tpu.memory_space<vmem>>, vector<8x256xf32>
    tpu.vector_store %arg5[%c16_28, %c256_29], %69 {strides = array<i32>} : memref<72x512xf32, #tpu.memory_space<vmem>>, vector<8x256xf32>,
    %71 = vector.extract_strided_slice %60 {offsets = [0, 16], sizes = [8, 256], strides = [1, 1]} : vector<8x384xf32> to vector<8x256xf32>
    %cst_30 = arith.constant 0.000000e+00 : f32
    %72 = vector.broadcast %cst_30 : f32 to vector<8x256xf32>
    %73 = arith.select %21, %71, %72 : vector<8x256xi1>, vector<8x256xf32>
    %c24_31 = arith.constant 24 : index
    %c256_32 = arith.constant 256 : index
    %74 = vector.load %arg5[%c24_31, %c256_32] : memref<72x512xf32, #tpu.memory_space<vmem>>, vector<8x256xf32>
    tpu.vector_store %arg5[%c24_31, %c256_32], %73 {strides = array<i32>} : memref<72x512xf32, #tpu.memory_space<vmem>>, vector<8x256xf32>,
    %75 = vector.extract_strided_slice %60 {offsets = [0, 17], sizes = [8, 256], strides = [1, 1]} : vector<8x384xf32> to vector<8x256xf32>
    %c32_33 = arith.constant 32 : index
    %c256_34 = arith.constant 256 : index
    %76 = vector.load %arg5[%c32_33, %c256_34] : memref<72x512xf32, #tpu.memory_space<vmem>>, vector<8x256xf32>
    tpu.vector_store %arg5[%c32_33, %c256_34], %75 {strides = array<i32>} : memref<72x512xf32, #tpu.memory_space<vmem>>, vector<8x256xf32>,
    %77 = vector.extract_strided_slice %60 {offsets = [0, 18], sizes = [8, 256], strides = [1, 1]} : vector<8x384xf32> to vector<8x256xf32>
    %cst_35 = arith.constant 0.000000e+00 : f32
    %78 = vector.broadcast %cst_35 : f32 to vector<8x256xf32>
    %79 = arith.select %26, %77, %78 : vector<8x256xi1>, vector<8x256xf32>
    %c40_36 = arith.constant 40 : index
    %c256_37 = arith.constant 256 : index
    %80 = vector.load %arg5[%c40_36, %c256_37] : memref<72x512xf32, #tpu.memory_space<vmem>>, vector<8x256xf32>
    tpu.vector_store %arg5[%c40_36, %c256_37], %79 {strides = array<i32>} : memref<72x512xf32, #tpu.memory_space<vmem>>, vector<8x256xf32>,
    %81 = vector.extract_strided_slice %60 {offsets = [0, 32], sizes = [8, 256], strides = [1, 1]} : vector<8x384xf32> to vector<8x256xf32>
    %cst_38 = arith.constant 0.000000e+00 : f32
    %82 = vector.broadcast %cst_38 : f32 to vector<8x256xf32>
    %83 = arith.select %21, %81, %82 : vector<8x256xi1>, vector<8x256xf32>
    %c48_39 = arith.constant 48 : index
    %c256_40 = arith.constant 256 : index
    %84 = vector.load %arg5[%c48_39, %c256_40] : memref<72x512xf32, #tpu.memory_space<vmem>>, vector<8x256xf32>
    tpu.vector_store %arg5[%c48_39, %c256_40], %83 {strides = array<i32>} : memref<72x512xf32, #tpu.memory_space<vmem>>, vector<8x256xf32>,
    %85 = vector.extract_strided_slice %60 {offsets = [0, 33], sizes = [8, 256], strides = [1, 1]} : vector<8x384xf32> to vector<8x256xf32>
    %c56_41 = arith.constant 56 : index
    %c256_42 = arith.constant 256 : index
    %86 = vector.load %arg5[%c56_41, %c256_42] : memref<72x512xf32, #tpu.memory_space<vmem>>, vector<8x256xf32>
    tpu.vector_store %arg5[%c56_41, %c256_42], %85 {strides = array<i32>} : memref<72x512xf32, #tpu.memory_space<vmem>>, vector<8x256xf32>,
    %87 = vector.extract_strided_slice %60 {offsets = [0, 34], sizes = [8, 256], strides = [1, 1]} : vector<8x384xf32> to vector<8x256xf32>
    %cst_43 = arith.constant 0.000000e+00 : f32
    %88 = vector.broadcast %cst_43 : f32 to vector<8x256xf32>
    %89 = arith.select %26, %87, %88 : vector<8x256xi1>, vector<8x256xf32>
    %c64_44 = arith.constant 64 : index
    %c256_45 = arith.constant 256 : index
    %90 = vector.load %arg5[%c64_44, %c256_45] : memref<72x512xf32, #tpu.memory_space<vmem>>, vector<8x256xf32>
    tpu.vector_store %arg5[%c64_44, %c256_45], %89 {strides = array<i32>} : memref<72x512xf32, #tpu.memory_space<vmem>>, vector<8x256xf32>,
    %c0_46 = arith.constant 0 : index
    %c0_47 = arith.constant 0 : index
    %91 = vector.load %arg2[%c0_46, %c0_47] : memref<8x72xf32, #tpu.memory_space<vmem>>, vector<8x72xf32>
    %c0_48 = arith.constant 0 : index
    %c0_49 = arith.constant 0 : index
    %92 = vector.load %arg5[%c0_48, %c0_49] : memref<72x512xf32, #tpu.memory_space<vmem>>, vector<72x512xf32>
    %cst_50 = arith.constant dense<0.000000e+00> : vector<8x512xf32>
    %93 = tpu.matmul %91, %92, %cst_50 {dimension_numbers = #tpu.dot_dimension_numbers<[1], [0], [0], [1], [0, 0, 1, 1], [], []>} : vector<8x72xf32>, vector<72x512xf32>, vector<8x512xf32> -> vector<8x512xf32>
    %c0_51 = arith.constant 0 : index
    %c0_52 = arith.constant 0 : index
    %94 = vector.load %arg3[%c0_51, %c0_52] : memref<8x1xf32, #tpu.memory_space<vmem>>, vector<8x1xf32>
    %95 = vector.broadcast %94 : vector<8x1xf32> to vector<8x512xf32>
    %96 = arith.addf %93, %95 : vector<8x512xf32>
    %97 = vector.extract_strided_slice %96 {offsets = [0, 0], sizes = [8, 256], strides = [1, 1]} : vector<8x512xf32> to vector<8x256xf32>
    %c0_53 = arith.constant 0 : index
    %c0_54 = arith.constant 0 : index
    %c0_55 = arith.constant 0 : index
    %98 = vector.load %arg4[%c0_53, %c0_54, %c0_55] : memref<2x8x256xf32, #tpu.memory_space<vmem>>, vector<1x8x256xf32>
    %99 = vector.shape_cast %98 : vector<1x8x256xf32> to vector<8x256xf32>
    %100 = vector.shape_cast %97 : vector<8x256xf32> to vector<1x8x256xf32>
    tpu.vector_store %arg4[%c0_53, %c0_54, %c0_55], %100 {strides = array<i32>} : memref<2x8x256xf32, #tpu.memory_space<vmem>>, vector<1x8x256xf32>,
    %101 = vector.extract_strided_slice %96 {offsets = [0, 256], sizes = [8, 256], strides = [1, 1]} : vector<8x512xf32> to vector<8x256xf32>
    %c1_56 = arith.constant 1 : index
    %c0_57 = arith.constant 0 : index
    %c0_58 = arith.constant 0 : index
    %102 = vector.load %arg4[%c1_56, %c0_57, %c0_58] : memref<2x8x256xf32, #tpu.memory_space<vmem>>, vector<1x8x256xf32>
    %103 = vector.shape_cast %102 : vector<1x8x256xf32> to vector<8x256xf32>
    %104 = vector.shape_cast %101 : vector<8x256xf32> to vector<1x8x256xf32>
    tpu.vector_store %arg4[%c1_56, %c0_57, %c0_58], %104 {strides = array<i32>} : memref<2x8x256xf32, #tpu.memory_space<vmem>>, vector<1x8x256xf32>,
    return
  }
  func.func @transform_0(%arg0: i32) -> (i32, i32, i32) {
    %c0_i32 = arith.constant 0 : i32
    %c0_i32_0 = arith.constant 0 : i32
    %c0_i32_1 = arith.constant 0 : i32
    return %arg0, %c0_i32, %c0_i32_0 : i32, i32, i32
  }
  func.func @transform_1(%arg0: i32) -> (i32, i32) {
    %c0_i32 = arith.constant 0 : i32
    %c0_i32_0 = arith.constant 0 : i32
    %c0_i32_1 = arith.constant 0 : i32
    return %c0_i32, %c0_i32_0 : i32, i32
  }
  func.func @transform_2(%arg0: i32) -> (i32, i32) {
    %c0_i32 = arith.constant 0 : i32
    %c0_i32_0 = arith.constant 0 : i32
    %c0_i32_1 = arith.constant 0 : i32
    return %c0_i32, %c0_i32_0 : i32, i32
  }
  func.func @transform_3(%arg0: i32) -> (i32, i32, i32) {
    %c0_i32 = arith.constant 0 : i32
    %c0_i32_0 = arith.constant 0 : i32
    %c0_i32_1 = arith.constant 0 : i32
    return %arg0, %c0_i32, %c0_i32_0 : i32, i32, i32
  }
}

</mosaic_0001>

<llo_original>
// kernel: tpu_custom_call.1
$region0: #{tpu_custom_call.1}
  #allocation0 [shape = 'u32[]', space=smem, size = 0x4, offset = 0x4, fixed_abs, tag = 'smem constant byte address 0x4 - core index']
  #allocation1 [shape = 'u32[144,128]{1,0:T(1,128)}', space=vmem, size = 0x12000, scoped, tag = 'internal scratch']
  #allocation2 [shape = 'f32[72,512]{1,0:T(8,128)}', space=vmem, size = 0x24000, scoped, tag = 'scratch operand']
  %s0 = inlined_call_operand.hbm [shape: f32[2,8,384], index: 0, kind: input, shape index: {}]
  %s1 = inlined_call_operand.vmem [shape: f32[8,72], index: 1, kind: input, shape index: {}]
  %s2 = inlined_call_operand.vmem [shape: f32[8,1], index: 2, kind: input, shape index: {}]
  %s3 = inlined_call_operand.hbm [shape: f32[2,8,256], index: 3, kind: output, shape index: {}]
  %s4 = sld [smem:[#allocation0]]
  $region26: #{tpu_custom_call.1} parent=0
    _
  %s6 = ssub.s32 1, %s4
  %s7 = scalar_select 0, %s6, %s4
  $region1: #{tpu_custom_call.1} parent=0
    #allocation3 [shape = 'u8[24576]{0}', space=vmem, size = 0x6000, scoped, tag = 'input window, operand 0, single buffered']
    #allocation4 [shape = 's32[1]{0}', space=sflag, size = 0x4, scoped, tag = 'scoped memory for tpu_custom_call.1']
    #allocation5 [shape = 's32[1]{0}', space=sflag, size = 0x4, scoped, tag = 'scoped memory for tpu_custom_call.1']
    #allocation6 [shape = 'u8[16384]{0}', space=vmem, size = 0x4000, scoped, tag = 'output window, operand 0, single buffered']
    %8 = vsyncpa [#allocation4], 0
    %9 = vsyncpa [#allocation5], 0
    // Predicated region
    $region2: #{tpu_custom_call.1} parent=1 // pred_check
      _
    $region3: #{tpu_custom_call.1} parent=1 // pred_check_branch
      %11 = sbr.rel (0) target = $region5
    $region4: #{tpu_custom_call.1} parent=1 // pred_region
      %s13 = ssub.s32 768, 768
      %14 = vsyncadd [#allocation4], %s13
      %s15 = sshll.u32 [#allocation3], 4
      %s16 = int_to_ptr.vmem [resolvable:$true] %s15
      %21 = dma.hbm_to_vmem [thread:$0]  %s0, 768, %s16, [#allocation4], 384, 384, 24
    $region5: #{tpu_custom_call.1} parent=1 // pred_fallthru
      _
    // Predicated region
    $region6: #{tpu_custom_call.1} parent=1 // pred_check
      _
    $region7: #{tpu_custom_call.1} parent=1 // pred_check_branch
      %23 = sbr.rel (0) target = $region9
    $region8: #{tpu_custom_call.1} parent=1 // pred_region
      _
    $region9: #{tpu_custom_call.1} parent=1 // pred_fallthru
      _
    // Predicated region
    $region10: #{tpu_custom_call.1} parent=1 // pred_check
      _
    $region11: #{tpu_custom_call.1} parent=1 // pred_check_branch
      %25 = sbr.rel (0) target = $region13
    $region12: #{tpu_custom_call.1} parent=1 // pred_region
      _
    $region13: #{tpu_custom_call.1} parent=1 // pred_fallthru
      _
    // Predicated region
    $region14: #{tpu_custom_call.1} parent=1 // pred_check
      _
    $region15: #{tpu_custom_call.1} parent=1 // pred_check_branch
      %27 = sbr.rel (0) target = $region17
    $region16: #{tpu_custom_call.1} parent=1 // pred_region
      %28 = dma.done [#allocation4], 768
    $region17: #{tpu_custom_call.1} parent=1 // pred_fallthru
      _
    %v29 = vlaneseq
    %v30 = vand.u32 %v29, 127
    %v31 = vadd.s32 %v30, 128
    %vm32 = vcmp.lt.s32.totalorder %v30, 0
    %v33 = vsub.s32 0, %v30
    %v34 = vsel %vm32, %v33, %v30
    %v35 = vshrl.u32 %v34, 4
    %v36 = vand.u32 %v34, 15
    %v37 = vsub.s32 0, %v36
    %v38 = vsel %vm32, %v37, %v36
    %vm39 = vcmp.lt.s32.totalorder %v31, 0
    %v40 = vsub.s32 0, %v31
    %v41 = vsel %vm39, %v40, %v31
    %v42 = vshrl.u32 %v41, 4
    %v43 = vand.u32 %v41, 15
    %v44 = vsub.s32 0, %v43
    %v45 = vsel %vm39, %v44, %v43
    %vm46 = vcmp.ne.s32.totalorder %v38, 0
    %vm47 = vcmp.ne.s32.totalorder %v45, 0
    %vm48 = vcmp.lt.s32.totalorder %v38, 0
    %vm49 = vcmp.lt.s32.totalorder %v45, 0
    %vm50 = vmand %vm48, %vm46
    %vm51 = vmand %vm49, %vm47
    %v52 = vadd.s32 %v38, 16
    %v53 = vadd.s32 %v45, 16
    %v54 = vsel %vm50, %v52, %v38
    %v55 = vsel %vm51, %v53, %v45
    %vm56 = vcmp.ge.s32.totalorder %v54, 1
    %vm57 = vcmp.ge.s32.totalorder %v55, 1
    %vm58 = vcmp.lt.s32.totalorder %v54, 17
    %vm59 = vcmp.lt.s32.totalorder %v55, 17
    %vm60 = vmand %vm56, %vm58
    %vm61 = vmand %vm57, %vm59
    %vm62 = vcmp.ge.s32.totalorder %v54, 4294967295
    %vm63 = vcmp.ge.s32.totalorder %v55, 4294967295
    %vm64 = vcmp.lt.s32.totalorder %v54, 15
    %vm65 = vcmp.lt.s32.totalorder %v55, 15
    %vm66 = vmand %vm62, %vm64
    %vm67 = vmand %vm63, %vm65
    %v68 = vld [vmem:[#allocation3] sm:$0xff]
    %v69 = vld [vmem:[#allocation3 + $0x8] sm:$0xff]
    %v70 = vld [vmem:[#allocation3 + $0x10] sm:$0xff]
    %v71 = vsel %vm60, %v68, 0.0
    %v72 = vsel %vm61, %v69, 0.0
    %73 = vst [vmem:[#allocation2] sm:$0xff] %v71
    %74 = vst [vmem:[#allocation2 + $0x8] sm:$0xff] %v72
    %78 = vrot.lane.b32.xlu0 %v68, 127
    %v79 = vpop.permute.xlu0 %78
    %80 = vrot.lane.b32.xlu0 %v69, 127
    %v81 = vpop.permute.xlu0 %80
    %82 = vrot.lane.b32.xlu0 %v70, 127
    %v83 = vpop.permute.xlu0 %82
    %vm84 = vcmask 1039360
    %v85 = vsel %vm84, %v79, %v81
    %v86 = vsel %vm84, %v81, %v83
    %89 = vst [vmem:[#allocation2 + $0x20] sm:$0xff] %v85
    %90 = vst [vmem:[#allocation2 + $0x28] sm:$0xff] %v86
    %91 = vrot.lane.b32.xlu0 %v68, 126
    %v92 = vpop.permute.xlu0 %91
    %93 = vrot.lane.b32.xlu0 %v69, 126
    %v94 = vpop.permute.xlu0 %93
    %95 = vrot.lane.b32.xlu0 %v70, 126
    %v96 = vpop.permute.xlu0 %95
    %vm97 = vcmask 1031168
    %v98 = vsel %vm97, %v92, %v94
    %v99 = vsel %vm97, %v94, %v96
    %v102 = vsel %vm66, %v98, 0.0
    %v103 = vsel %vm67, %v99, 0.0
    %104 = vst [vmem:[#allocation2 + $0x40] sm:$0xff] %v102
    %105 = vst [vmem:[#allocation2 + $0x48] sm:$0xff] %v103
    %106 = vrot.lane.b32.xlu0 %v68, 112
    %v107 = vpop.permute.xlu0 %106
    %108 = vrot.lane.b32.xlu0 %v69, 112
    %v109 = vpop.permute.xlu0 %108
    %110 = vrot.lane.b32.xlu0 %v70, 112
    %v111 = vpop.permute.xlu0 %110
    %vm112 = vcmask 916480
    %v113 = vsel %vm112, %v107, %v109
    %v114 = vsel %vm112, %v109, %v111
    %v117 = vsel %vm60, %v113, 0.0
    %v118 = vsel %vm61, %v114, 0.0
    %119 = vst [vmem:[#allocation2 + $0x60] sm:$0xff] %v117
    %120 = vst [vmem:[#allocation2 + $0x68] sm:$0xff] %v118
    %121 = vrot.lane.b32.xlu0 %v68, 111
    %v122 = vpop.permute.xlu0 %121
    %123 = vrot.lane.b32.xlu0 %v69, 111
    %v124 = vpop.permute.xlu0 %123
    %125 = vrot.lane.b32.xlu0 %v70, 111
    %v126 = vpop.permute.xlu0 %125
    %vm127 = vcmask 908288
    %v128 = vsel %vm127, %v122, %v124
    %v129 = vsel %vm127, %v124, %v126
    %132 = vst [vmem:[#allocation2 + $0x80] sm:$0xff] %v128
    %133 = vst [vmem:[#allocation2 + $0x88] sm:$0xff] %v129
    %134 = vrot.lane.b32.xlu0 %v68, 110
    %v135 = vpop.permute.xlu0 %134
    %136 = vrot.lane.b32.xlu0 %v69, 110
    %v137 = vpop.permute.xlu0 %136
    %138 = vrot.lane.b32.xlu0 %v70, 110
    %v139 = vpop.permute.xlu0 %138
    %vm140 = vcmask 900096
    %v141 = vsel %vm140, %v135, %v137
    %v142 = vsel %vm140, %v137, %v139
    %v145 = vsel %vm66, %v141, 0.0
    %v146 = vsel %vm67, %v142, 0.0
    %147 = vst [vmem:[#allocation2 + $0xa0] sm:$0xff] %v145
    %148 = vst [vmem:[#allocation2 + $0xa8] sm:$0xff] %v146
    %149 = vrot.lane.b32.xlu0 %v68, 96
    %v150 = vpop.permute.xlu0 %149
    %151 = vrot.lane.b32.xlu0 %v69, 96
    %v152 = vpop.permute.xlu0 %151
    %153 = vrot.lane.b32.xlu0 %v70, 96
    %v154 = vpop.permute.xlu0 %153
    %vm155 = vcmask 785408
    %v156 = vsel %vm155, %v150, %v152
    %v157 = vsel %vm155, %v152, %v154
    %v160 = vsel %vm60, %v156, 0.0
    %v161 = vsel %vm61, %v157, 0.0
    %162 = vst [vmem:[#allocation2 + $0xc0] sm:$0xff] %v160
    %163 = vst [vmem:[#allocation2 + $0xc8] sm:$0xff] %v161
    %164 = vrot.lane.b32.xlu0 %v68, 95
    %v165 = vpop.permute.xlu0 %164
    %166 = vrot.lane.b32.xlu0 %v69, 95
    %v167 = vpop.permute.xlu0 %166
    %168 = vrot.lane.b32.xlu0 %v70, 95
    %v169 = vpop.permute.xlu0 %168
    %vm170 = vcmask 777216
    %v171 = vsel %vm170, %v165, %v167
    %v172 = vsel %vm170, %v167, %v169
    %175 = vst [vmem:[#allocation2 + $0xe0] sm:$0xff] %v171
    %176 = vst [vmem:[#allocation2 + $0xe8] sm:$0xff] %v172
    %177 = vrot.lane.b32.xlu0 %v68, 94
    %v178 = vpop.permute.xlu0 %177
    %179 = vrot.lane.b32.xlu0 %v69, 94
    %v180 = vpop.permute.xlu0 %179
    %181 = vrot.lane.b32.xlu0 %v70, 94
    %v182 = vpop.permute.xlu0 %181
    %vm183 = vcmask 769024
    %v184 = vsel %vm183, %v178, %v180
    %v185 = vsel %vm183, %v180, %v182
    %v188 = vsel %vm66, %v184, 0.0
    %v189 = vsel %vm67, %v185, 0.0
    %190 = vst [vmem:[#allocation2 + $0x100] sm:$0xff] %v188
    %191 = vst [vmem:[#allocation2 + $0x108] sm:$0xff] %v189
    %s192 = scalar_lea.vmem [#allocation3], 24
    %v193 = vld [vmem:[%s192] sm:$0xff]
    %v194 = vld [vmem:[%s192 + $0x8] sm:$0xff]
    %v195 = vld [vmem:[%s192 + $0x10] sm:$0xff]
    %v196 = vsel %vm60, %v193, 0.0
    %v197 = vsel %vm61, %v194, 0.0
    %198 = vst [vmem:[#allocation2 + $0x10] sm:$0xff] %v196
    %199 = vst [vmem:[#allocation2 + $0x18] sm:$0xff] %v197
    %203 = vrot.lane.b32.xlu0 %v193, 127
    %v204 = vpop.permute.xlu0 %203
    %205 = vrot.lane.b32.xlu0 %v194, 127
    %v206 = vpop.permute.xlu0 %205
    %207 = vrot.lane.b32.xlu0 %v195, 127
    %v208 = vpop.permute.xlu0 %207
    %v209 = vsel %vm84, %v204, %v206
    %v210 = vsel %vm84, %v206, %v208
    %213 = vst [vmem:[#allocation2 + $0x30] sm:$0xff] %v209
    %214 = vst [vmem:[#allocation2 + $0x38] sm:$0xff] %v210
    %215 = vrot.lane.b32.xlu0 %v193, 126
    %v216 = vpop.permute.xlu0 %215
    %217 = vrot.lane.b32.xlu0 %v194, 126
    %v218 = vpop.permute.xlu0 %217
    %219 = vrot.lane.b32.xlu0 %v195, 126
    %v220 = vpop.permute.xlu0 %219
    %v221 = vsel %vm97, %v216, %v218
    %v222 = vsel %vm97, %v218, %v220
    %v225 = vsel %vm66, %v221, 0.0
    %v226 = vsel %vm67, %v222, 0.0
    %227 = vst [vmem:[#allocation2 + $0x50] sm:$0xff] %v225
    %228 = vst [vmem:[#allocation2 + $0x58] sm:$0xff] %v226
    %229 = vrot.lane.b32.xlu0 %v193, 112
    %v230 = vpop.permute.xlu0 %229
    %231 = vrot.lane.b32.xlu0 %v194, 112
    %v232 = vpop.permute.xlu0 %231
    %233 = vrot.lane.b32.xlu0 %v195, 112
    %v234 = vpop.permute.xlu0 %233
    %v235 = vsel %vm112, %v230, %v232
    %v236 = vsel %vm112, %v232, %v234
    %v239 = vsel %vm60, %v235, 0.0
    %v240 = vsel %vm61, %v236, 0.0
    %241 = vst [vmem:[#allocation2 + $0x70] sm:$0xff] %v239
    %242 = vst [vmem:[#allocation2 + $0x78] sm:$0xff] %v240
    %243 = vrot.lane.b32.xlu0 %v193, 111
    %v244 = vpop.permute.xlu0 %243
    %245 = vrot.lane.b32.xlu0 %v194, 111
    %v246 = vpop.permute.xlu0 %245
    %247 = vrot.lane.b32.xlu0 %v195, 111
    %v248 = vpop.permute.xlu0 %247
    %v249 = vsel %vm127, %v244, %v246
    %v250 = vsel %vm127, %v246, %v248
    %253 = vst [vmem:[#allocation2 + $0x90] sm:$0xff] %v249
    %254 = vst [vmem:[#allocation2 + $0x98] sm:$0xff] %v250
    %255 = vrot.lane.b32.xlu0 %v193, 110
    %v256 = vpop.permute.xlu0 %255
    %257 = vrot.lane.b32.xlu0 %v194, 110
    %v258 = vpop.permute.xlu0 %257
    %259 = vrot.lane.b32.xlu0 %v195, 110
    %v260 = vpop.permute.xlu0 %259
    %v261 = vsel %vm140, %v256, %v258
    %v262 = vsel %vm140, %v258, %v260
    %v265 = vsel %vm66, %v261, 0.0
    %v266 = vsel %vm67, %v262, 0.0
    %267 = vst [vmem:[#allocation2 + $0xb0] sm:$0xff] %v265
    %268 = vst [vmem:[#allocation2 + $0xb8] sm:$0xff] %v266
    %269 = vrot.lane.b32.xlu0 %v193, 96
    %v270 = vpop.permute.xlu0 %269
    %271 = vrot.lane.b32.xlu0 %v194, 96
    %v272 = vpop.permute.xlu0 %271
    %273 = vrot.lane.b32.xlu0 %v195, 96
    %v274 = vpop.permute.xlu0 %273
    %v275 = vsel %vm155, %v270, %v272
    %v276 = vsel %vm155, %v272, %v274
    %v279 = vsel %vm60, %v275, 0.0
    %v280 = vsel %vm61, %v276, 0.0
    %281 = vst [vmem:[#allocation2 + $0xd0] sm:$0xff] %v279
    %282 = vst [vmem:[#allocation2 + $0xd8] sm:$0xff] %v280
    %283 = vrot.lane.b32.xlu0 %v193, 95
    %v284 = vpop.permute.xlu0 %283
    %285 = vrot.lane.b32.xlu0 %v194, 95
    %v286 = vpop.permute.xlu0 %285
    %287 = vrot.lane.b32.xlu0 %v195, 95
    %v288 = vpop.permute.xlu0 %287
    %v289 = vsel %vm170, %v284, %v286
    %v290 = vsel %vm170, %v286, %v288
    %293 = vst [vmem:[#allocation2 + $0xf0] sm:$0xff] %v289
    %294 = vst [vmem:[#allocation2 + $0xf8] sm:$0xff] %v290
    %295 = vrot.lane.b32.xlu0 %v193, 94
    %v296 = vpop.permute.xlu0 %295
    %297 = vrot.lane.b32.xlu0 %v194, 94
    %v298 = vpop.permute.xlu0 %297
    %299 = vrot.lane.b32.xlu0 %v195, 94
    %v300 = vpop.permute.xlu0 %299
    %v301 = vsel %vm183, %v296, %v298
    %v302 = vsel %vm183, %v298, %v300
    %v305 = vsel %vm66, %v301, 0.0
    %v306 = vsel %vm67, %v302, 0.0
    %307 = vst [vmem:[#allocation2 + $0x110] sm:$0xff] %v305
    %308 = vst [vmem:[#allocation2 + $0x118] sm:$0xff] %v306
    %v309 = vld [vmem:[%s1] sm:$0xff]
    %v310 = vld [vmem:[#allocation2] sm:$0xff]
    %v311 = vld [vmem:[#allocation2 + $0x8] sm:$0xff]
    %v312 = vld [vmem:[#allocation2 + $0x10] sm:$0xff]
    %v313 = vld [vmem:[#allocation2 + $0x18] sm:$0xff]
    %v314 = vld [vmem:[#allocation2 + $0x20] sm:$0xff]
    %v315 = vld [vmem:[#allocation2 + $0x28] sm:$0xff]
    %v316 = vld [vmem:[#allocation2 + $0x30] sm:$0xff]
    %v317 = vld [vmem:[#allocation2 + $0x38] sm:$0xff]
    %v318 = vld [vmem:[#allocation2 + $0x40] sm:$0xff]
    %v319 = vld [vmem:[#allocation2 + $0x48] sm:$0xff]
    %v320 = vld [vmem:[#allocation2 + $0x50] sm:$0xff]
    %v321 = vld [vmem:[#allocation2 + $0x58] sm:$0xff]
    %v322 = vld [vmem:[#allocation2 + $0x60] sm:$0xff]
    %v323 = vld [vmem:[#allocation2 + $0x68] sm:$0xff]
    %v324 = vld [vmem:[#allocation2 + $0x70] sm:$0xff]
    %v325 = vld [vmem:[#allocation2 + $0x78] sm:$0xff]
    %v326 = vld [vmem:[#allocation2 + $0x80] sm:$0xff]
    %v327 = vld [vmem:[#allocation2 + $0x88] sm:$0xff]
    %v328 = vld [vmem:[#allocation2 + $0x90] sm:$0xff]
    %v329 = vld [vmem:[#allocation2 + $0x98] sm:$0xff]
    %v330 = vld [vmem:[#allocation2 + $0xa0] sm:$0xff]
    %v331 = vld [vmem:[#allocation2 + $0xa8] sm:$0xff]
    %v332 = vld [vmem:[#allocation2 + $0xb0] sm:$0xff]
    %v333 = vld [vmem:[#allocation2 + $0xb8] sm:$0xff]
    %v334 = vld [vmem:[#allocation2 + $0xc0] sm:$0xff]
    %v335 = vld [vmem:[#allocation2 + $0xc8] sm:$0xff]
    %v336 = vld [vmem:[#allocation2 + $0xd0] sm:$0xff]
    %v337 = vld [vmem:[#allocation2 + $0xd8] sm:$0xff]
    %v338 = vld [vmem:[#allocation2 + $0xe0] sm:$0xff]
    %v339 = vld [vmem:[#allocation2 + $0xe8] sm:$0xff]
    %v340 = vld [vmem:[#allocation2 + $0xf0] sm:$0xff]
    %v341 = vld [vmem:[#allocation2 + $0xf8] sm:$0xff]
    %v342 = vld [vmem:[#allocation2 + $0x100] sm:$0xff]
    %v343 = vld [vmem:[#allocation2 + $0x108] sm:$0xff]
    %v344 = vld [vmem:[#allocation2 + $0x110] sm:$0xff]
    %v345 = vld [vmem:[#allocation2 + $0x118] sm:$0xff]
    %v346 = vld [vmem:[%s2] sm:$0xff]
    %348 = vset.pattern.permute.xlu0 0
    %349 = vperm.xlu0 %348, %v346
    %v350 = vpop.permute.xlu0 %349
    %vm352 = vcmask 588800
    %v354 = vsel %vm352, %v309, 0
    %356 = vmatprep.subr.mxu0 0.0
    %357 = vmatpush1.msra.mxu0 0.0
    %358 = vmatprep.subr.mxu0 0.0
    %359 = vmatpush1.msra.mxu0 0.0
    %360 = vmatprep.subr.mxu0 0.0
    %361 = vmatpush1.msra.mxu0 0.0
    %362 = vmatprep.subr.mxu0 0.0
    %363 = vmatpush1.msra.mxu0 0.0
    %364 = vmatprep.subr.mxu0 0.0
    %365 = vmatpush1.msra.mxu0 0.0
    %366 = vmatprep.subr.mxu0 0.0
    %367 = vmatpush1.msra.mxu0 0.0
    %368 = vmatprep.subr.mxu0 0.0
    %369 = vmatpush1.msra.mxu0 0.0
    %370 = vmatprep.subr.mxu0 %v343
    %371 = vmatpush1.msra.mxu0 %v342
    %372 = vmatprep.subr.mxu0 %v339
    %373 = vmatpush1.msra.mxu0 %v338
    %374 = vmatprep.subr.mxu0 %v335
    %375 = vmatpush1.msra.mxu0 %v334
    %376 = vmatprep.subr.mxu0 %v331
    %377 = vmatpush1.msra.mxu0 %v330
    %378 = vmatprep.subr.mxu0 %v327
    %379 = vmatpush1.msra.mxu0 %v326
    %380 = vmatprep.subr.mxu0 %v323
    %381 = vmatpush1.msra.mxu0 %v322
    %382 = vmatprep.subr.mxu0 %v319
    %383 = vmatpush1.msra.mxu0 %v318
    %384 = vmatprep.subr.mxu0 %v315
    %385 = vmatpush1.msra.mxu0 %v314
    %386 = vmatprep.subr.mxu0 %v311
    %387 = vmatpush1.msra.mxu0 %v310
    %388 = vmatprep.subr.mxu0 0.0
    %389 = vmatpush2.msra.mxu0 0.0
    %390 = vmatprep.subr.mxu0 0.0
    %391 = vmatpush2.msra.mxu0 0.0
    %392 = vmatprep.subr.mxu0 0.0
    %393 = vmatpush2.msra.mxu0 0.0
    %394 = vmatprep.subr.mxu0 0.0
    %395 = vmatpush2.msra.mxu0 0.0
    %396 = vmatprep.subr.mxu0 0.0
    %397 = vmatpush2.msra.mxu0 0.0
    %398 = vmatprep.subr.mxu0 0.0
    %399 = vmatpush2.msra.mxu0 0.0
    %400 = vmatprep.subr.mxu0 0.0
    %401 = vmatpush2.msra.mxu0 0.0
    %402 = vmatprep.subr.mxu0 0.0
    %403 = vmatpush2.msra.mxu0 0.0
    %404 = vmatprep.subr.mxu0 0.0
    %405 = vmatpush2.msra.mxu0 0.0
    %406 = vmatprep.subr.mxu0 0.0
    %407 = vmatpush2.msra.mxu0 0.0
    %408 = vmatprep.subr.mxu0 0.0
    %409 = vmatpush2.msra.mxu0 0.0
    %410 = vmatprep.subr.mxu0 0.0
    %411 = vmatpush2.msra.mxu0 0.0
    %412 = vmatprep.subr.mxu0 0.0
    %413 = vmatpush2.msra.mxu0 0.0
    %414 = vmatprep.subr.mxu0 0.0
    %415 = vmatpush2.msra.mxu0 0.0
    %416 = vmatprep.subr.mxu0 0.0
    %417 = vmatpush2.msra.mxu0 0.0
    %418 = vmatprep.subr.mxu0 0.0
    %419 = vmatpush2.msra.mxu0 0.0
    %420 = vmatprep.mubr.f32.mxu0 0.0
    %421 = vmatmul.mubr.f32.gmra.mxu0 %v354
    %v422 = vpop.f32.mrf.mxu0
    %v423 = vadd.f32 %v350, %v422
    %v424 = vpop.f32.mrf.mxu0
    %v425 = vadd.f32 %v350, %v424
    %426 = vdwg.mxu0
    %427 = vmatprep.subr.mxu0 0.0
    %428 = vmatpush1.msra.mxu0 0.0
    %429 = vmatprep.subr.mxu0 0.0
    %430 = vmatpush1.msra.mxu0 0.0
    %431 = vmatprep.subr.mxu0 0.0
    %432 = vmatpush1.msra.mxu0 0.0
    %433 = vmatprep.subr.mxu0 0.0
    %434 = vmatpush1.msra.mxu0 0.0
    %435 = vmatprep.subr.mxu0 0.0
    %436 = vmatpush1.msra.mxu0 0.0
    %437 = vmatprep.subr.mxu0 0.0
    %438 = vmatpush1.msra.mxu0 0.0
    %439 = vmatprep.subr.mxu0 0.0
    %440 = vmatpush1.msra.mxu0 0.0
    %441 = vmatprep.subr.mxu0 %v345
    %442 = vmatpush1.msra.mxu0 %v344
    %443 = vmatprep.subr.mxu0 %v341
    %444 = vmatpush1.msra.mxu0 %v340
    %445 = vmatprep.subr.mxu0 %v337
    %446 = vmatpush1.msra.mxu0 %v336
    %447 = vmatprep.subr.mxu0 %v333
    %448 = vmatpush1.msra.mxu0 %v332
    %449 = vmatprep.subr.mxu0 %v329
    %450 = vmatpush1.msra.mxu0 %v328
    %451 = vmatprep.subr.mxu0 %v325
    %452 = vmatpush1.msra.mxu0 %v324
    %453 = vmatprep.subr.mxu0 %v321
    %454 = vmatpush1.msra.mxu0 %v320
    %455 = vmatprep.subr.mxu0 %v317
    %456 = vmatpush1.msra.mxu0 %v316
    %457 = vmatprep.subr.mxu0 %v313
    %458 = vmatpush1.msra.mxu0 %v312
    %459 = vmatprep.subr.mxu0 0.0
    %460 = vmatpush2.msra.mxu0 0.0
    %461 = vmatprep.subr.mxu0 0.0
    %462 = vmatpush2.msra.mxu0 0.0
    %463 = vmatprep.subr.mxu0 0.0
    %464 = vmatpush2.msra.mxu0 0.0
    %465 = vmatprep.subr.mxu0 0.0
    %466 = vmatpush2.msra.mxu0 0.0
    %467 = vmatprep.subr.mxu0 0.0
    %468 = vmatpush2.msra.mxu0 0.0
    %469 = vmatprep.subr.mxu0 0.0
    %470 = vmatpush2.msra.mxu0 0.0
    %471 = vmatprep.subr.mxu0 0.0
    %472 = vmatpush2.msra.mxu0 0.0
    %473 = vmatprep.subr.mxu0 0.0
    %474 = vmatpush2.msra.mxu0 0.0
    %475 = vmatprep.subr.mxu0 0.0
    %476 = vmatpush2.msra.mxu0 0.0
    %477 = vmatprep.subr.mxu0 0.0
    %478 = vmatpush2.msra.mxu0 0.0
    %479 = vmatprep.subr.mxu0 0.0
    %480 = vmatpush2.msra.mxu0 0.0
    %481 = vmatprep.subr.mxu0 0.0
    %482 = vmatpush2.msra.mxu0 0.0
    %483 = vmatprep.subr.mxu0 0.0
    %484 = vmatpush2.msra.mxu0 0.0
    %485 = vmatprep.subr.mxu0 0.0
    %486 = vmatpush2.msra.mxu0 0.0
    %487 = vmatprep.subr.mxu0 0.0
    %488 = vmatpush2.msra.mxu0 0.0
    %489 = vmatprep.subr.mxu0 0.0
    %490 = vmatpush2.msra.mxu0 0.0
    %491 = vmatprep.mubr.f32.mxu0 0.0
    %492 = vmatmul.mubr.f32.gmra.mxu0 %v354
    %v493 = vpop.f32.mrf.mxu0
    %v494 = vadd.f32 %v350, %v493
    %v495 = vpop.f32.mrf.mxu0
    %v496 = vadd.f32 %v350, %v495
    %497 = vdwg.mxu0
    %498 = vst [vmem:[#allocation6] sm:$0xff] %v423
    %499 = vst [vmem:[#allocation6 + $0x8] sm:$0xff] %v425
    %s500 = scalar_lea.vmem [#allocation6], 16
    %501 = vst [vmem:[%s500] sm:$0xff] %v494
    %502 = vst [vmem:[%s500 + $0x8] sm:$0xff] %v496
    // Predicated region
    $region18: #{tpu_custom_call.1} parent=1 // pred_check
      _
    $region19: #{tpu_custom_call.1} parent=1 // pred_check_branch
      %504 = sbr.rel (0) target = $region21
    $region20: #{tpu_custom_call.1} parent=1 // pred_region
      %s506 = ssub.s32 512, 512
      %507 = vsyncadd [#allocation5], %s506
      %s508 = sshll.u32 [#allocation6], 4
      %s509 = int_to_ptr.vmem [resolvable:$true] %s508
      %514 = dma.vmem_to_hbm [thread:$0]  %s509, 512, %s3, [#allocation5], 256, 256, 16
    $region21: #{tpu_custom_call.1} parent=1 // pred_fallthru
      _
    // Predicated region
    $region22: #{tpu_custom_call.1} parent=1 // pred_check
      _
    $region23: #{tpu_custom_call.1} parent=1 // pred_check_branch
      %516 = sbr.rel (0) target = $region25
    $region24: #{tpu_custom_call.1} parent=1 // pred_region
      %517 = dma.done [#allocation5], 512
    $region25: #{tpu_custom_call.1} parent=1 // pred_fallthru
      _
    %518 = vsyncpa [#allocation4], 1
    %519 = vsyncpa [#allocation5], 1

</llo_original>
